<compile_context>
chip_gen: v7x
topology: tpu7x:2x2x1
jax: 0.10.0
libtpu: 0.0.40
codegen_flags: <defaults>
</compile_context>

<pallas_src>
import jax
import jax.numpy as jnp
from jax import lax
from jax.experimental import pallas as pl
from jax.experimental.pallas import tpu as pltpu

CHUNK = 256  # lanes per inner step (2 x 128); keeps per-chunk live set small.


def qnet_kernel(x_ref,
                w1_ref, b1_ref,
                w2_ref, b2_ref,
                w3_ref, b3_ref,
                w4_ref, b4_ref,
                o_ref):
    # Feature-major: x_ref is (in_dim, TB) bf16; each layer is W @ h + b with
    # W: (fan_out, fan_in) bf16 and b: (fan_out, CHUNK) f32 (pre-broadcast in the
    # wrapper).  MXU accumulation in f32; sigmoid in f32 via tanh; next-layer
    # operand cast to bf16.
    w1 = w1_ref[...]
    w2 = w2_ref[...]
    w3 = w3_ref[...]
    w4 = w4_ref[...]
    b1 = b1_ref[...]
    b2 = b2_ref[...]
    b3 = b3_ref[...]
    b4 = b4_ref[...]

    n_chunks = x_ref.shape[1] // CHUNK  # static

    def sigmoid(z):
        # sigmoid(z) = 0.5 * tanh(z / 2) + 0.5  -> single EUP transcendental.
        return 0.5 * jnp.tanh(0.5 * z) + 0.5

    def chunk_body(c, carry):
        off = pl.multiple_of(c * CHUNK, CHUNK)
        h = x_ref[:, pl.ds(off, CHUNK)]                                  # bf16 (in_dim, CHUNK)
        z = jnp.dot(w1, h, preferred_element_type=jnp.float32) + b1      # f32 (32, CHUNK)
        h = sigmoid(z).astype(jnp.bfloat16)
        z = jnp.dot(w2, h, preferred_element_type=jnp.float32) + b2      # f32 (64, CHUNK)
        h = sigmoid(z).astype(jnp.bfloat16)
        z = jnp.dot(w3, h, preferred_element_type=jnp.float32) + b3      # f32 (32, CHUNK)
        h = sigmoid(z).astype(jnp.bfloat16)
        o_ref[:, pl.ds(off, CHUNK)] = (
            jnp.dot(w4, h, preferred_element_type=jnp.float32) + b4)     # f32 (out_dim, CHUNK)
        return carry

    lax.fori_loop(0, n_chunks, chunk_body, 0, unroll=True)


def qnet_forward(x, params, tb=2048):
    """x: (B, in_dim) f32; params: list of (W, b), W:(fan_out, fan_in), b:(fan_out, 1)."""
    B, in_dim = x.shape
    out_dim = params[-1][0].shape[0]

    # Tile sizing in CHUNK units.
    total_chunks = max(1, pl.cdiv(B, CHUNK))
    req_chunks = max(1, tb // CHUNK)
    if total_chunks <= req_chunks:
        chunks_per_tile = total_chunks            # one tile covers the whole batch
    else:
        # v7x megacore: guarantee >= 2 grid steps so both TensorCores get work.
        chunks_per_tile = min(req_chunks, pl.cdiv(total_chunks, 2))
    tb = chunks_per_tile * CHUNK
    n_tiles = pl.cdiv(total_chunks, chunks_per_tile)
    b_padded = n_tiles * tb

    # Feature-major bf16 input (halves x DMA bytes), zero-padded along lanes.
    # TODO(synk): accept/return feature-major (D, B) arrays from the caller to
    # drop the wrapper-side transpose/pad passes entirely at large B.
    xt = jnp.pad(x.astype(jnp.bfloat16).T, ((0, 0), (0, b_padded - B)))   # (in_dim, Bp)

    flat_args = [xt]
    in_specs = [pl.BlockSpec((in_dim, tb), lambda i: (0, i))]             # streamed per tile
    for w, b in params:
        wb = w.astype(jnp.bfloat16)                                       # (fan_out, fan_in)
        bb = jnp.broadcast_to(b.astype(jnp.float32).reshape(-1, 1),
                              (w.shape[0], CHUNK))                        # (fan_out, CHUNK) f32
        flat_args.extend([wb, bb])
        # Grid-invariant: fetched once, resident in VMEM for all batch tiles.
        in_specs.append(pl.BlockSpec(wb.shape, lambda i: (0, 0)))
        in_specs.append(pl.BlockSpec(bb.shape, lambda i: (0, 0)))

    hidden_outs = [w.shape[0] for w, _ in params]
    flops = 2 * B * sum(w.shape[0] * w.shape[1] for w, _ in params)
    transcendentals = B * sum(hidden_outs[:-1])
    bytes_accessed = (B * in_dim * 2 + B * out_dim * 4
                      + sum(w.size * 2 + w.shape[0] * CHUNK * 4 for w, _ in params))

    out_t = pl.pallas_call(
        qnet_kernel,
        out_shape=jax.ShapeDtypeStruct((out_dim, b_padded), jnp.float32),
        grid_spec=pltpu.PrefetchScalarGridSpec(
            num_scalar_prefetch=0,
            grid=(n_tiles,),
            in_specs=in_specs,
            out_specs=pl.BlockSpec((out_dim, tb), lambda i: (0, i)),
        ),
        compiler_params=pltpu.CompilerParams(
            dimension_semantics=("parallel",)),
        cost_estimate=pl.CostEstimate(
            flops=flops,
            transcendentals=transcendentals,
            bytes_accessed=bytes_accessed),
    )(*flat_args)

    return out_t[:, :B].T                                                 # back to (B, out_dim)


def init_qnet_params(key, in_dim, out_dim, hidden_dims=None):
    """Deterministic init mimicking torch.nn.Linear default (U[-1/sqrt(fan_in), +1/sqrt(fan_in)]).

    Weights in torch layout (fan_out, fan_in); biases as (fan_out, 1).
    """
    if hidden_dims is None:
        hidden_dims = [32, 64, 32]
    nn_dims = [in_dim] + hidden_dims + [out_dim]
    params = []
    for i in range(len(nn_dims) - 1):
        fan_in, fan_out = nn_dims[i], nn_dims[i + 1]
        key, kw, kb = jax.random.split(key, 3)
        bound = 1.0 / jnp.sqrt(jnp.float32(fan_in))
        w = jax.random.uniform(kw, (fan_out, fan_in), jnp.float32, -bound, bound)
        b = jax.random.uniform(kb, (fan_out, 1), jnp.float32, -bound, bound)
        params.append((w, b))
    return params


def qnet_reference(x, params):
    """Pure-JAX f32 reference matching the PyTorch forward semantics (batch-major)."""
    h = x
    n = len(params)
    for i, (w, b) in enumerate(params):
        h = h @ w.T + b.T
        if i != n - 1:
            h = jax.nn.sigmoid(h)
    return h


if __name__ == "__main__":
    in_dim, out_dim, batch = 8, 4, 2

    key = jax.random.PRNGKey(0)
    key, kx = jax.random.split(key)
    x = jax.random.normal(kx, (batch, in_dim), dtype=jnp.float32)

    params = init_qnet_params(key, in_dim, out_dim)

    # bf16 matmul operands -> relaxed tolerances vs the f32 reference.
    tol = dict(atol=5e-2, rtol=5e-2)

    # Small-batch case (single tile, padded 2 -> 256).
    out = jax.block_until_ready(qnet_forward(x, params))
    ref = qnet_reference(x, params)
    assert out.shape == (batch, out_dim)
    assert jnp.allclose(out, ref, **tol), "Pallas output mismatch vs reference"

    # Multi-tile case: exercises the batch grid (2 steps), inner chunk loop and
    # final-partial-tile zero padding.
    key, kx2 = jax.random.split(key)
    x2 = jax.random.normal(kx2, (600, in_dim), dtype=jnp.float32)
    out2 = jax.block_until_ready(qnet_forward(x2, params, tb=512))
    ref2 = qnet_reference(x2, params)
    assert out2.shape == (600, out_dim)
    assert jnp.allclose(out2, ref2, **tol), "Pallas multi-tile mismatch"

    print("KERNEL_OK")
</pallas_src>

<mosaic_0001>
module attributes {stable_mosaic.version = 11 : i64} {
  func.func @qnet_kernel(%arg0: i32, %arg1: memref<8x256xbf16, #tpu.memory_space<vmem>>, %arg2: memref<32x8xbf16, #tpu.memory_space<vmem>>, %arg3: memref<32x256xf32, #tpu.memory_space<vmem>>, %arg4: memref<64x32xbf16, #tpu.memory_space<vmem>>, %arg5: memref<64x256xf32, #tpu.memory_space<vmem>>, %arg6: memref<32x64xbf16, #tpu.memory_space<vmem>>, %arg7: memref<32x256xf32, #tpu.memory_space<vmem>>, %arg8: memref<4x32xbf16, #tpu.memory_space<vmem>>, %arg9: memref<4x256xf32, #tpu.memory_space<vmem>>, %arg10: memref<4x256xf32, #tpu.memory_space<vmem>>) attributes {dimension_semantics = [#tpu.dimension_semantics<parallel>], iteration_bounds = array<i64: 1>, scalar_prefetch = 0 : i64, scratch_operands = 0 : i64, tpu.core_type = #tpu.core_type<tc>, window_params = [{transform_indices = @transform_0, window_bounds = array<i64: 8, 256>}, {pipeline_mode = #tpu.pipeline_mode<synchronous>, transform_indices = @transform_1, window_bounds = array<i64: 32, 8>}, {pipeline_mode = #tpu.pipeline_mode<synchronous>, transform_indices = @transform_2, window_bounds = array<i64: 32, 256>}, {pipeline_mode = #tpu.pipeline_mode<synchronous>, transform_indices = @transform_3, window_bounds = array<i64: 64, 32>}, {pipeline_mode = #tpu.pipeline_mode<synchronous>, transform_indices = @transform_4, window_bounds = array<i64: 64, 256>}, {pipeline_mode = #tpu.pipeline_mode<synchronous>, transform_indices = @transform_5, window_bounds = array<i64: 32, 64>}, {pipeline_mode = #tpu.pipeline_mode<synchronous>, transform_indices = @transform_6, window_bounds = array<i64: 32, 256>}, {pipeline_mode = #tpu.pipeline_mode<synchronous>, transform_indices = @transform_7, window_bounds = array<i64: 4, 32>}, {pipeline_mode = #tpu.pipeline_mode<synchronous>, transform_indices = @transform_8, window_bounds = array<i64: 4, 256>}, {transform_indices = @transform_9, window_bounds = array<i64: 4, 256>}]} {
    %c0 = arith.constant 0 : index
    %c0_0 = arith.constant 0 : index
    %0 = vector.load %arg2[%c0, %c0_0] : memref<32x8xbf16, #tpu.memory_space<vmem>>, vector<32x8xbf16>
    %c0_1 = arith.constant 0 : index
    %c0_2 = arith.constant 0 : index
    %1 = vector.load %arg4[%c0_1, %c0_2] : memref<64x32xbf16, #tpu.memory_space<vmem>>, vector<64x32xbf16>
    %c0_3 = arith.constant 0 : index
    %c0_4 = arith.constant 0 : index
    %2 = vector.load %arg6[%c0_3, %c0_4] : memref<32x64xbf16, #tpu.memory_space<vmem>>, vector<32x64xbf16>
    %c0_5 = arith.constant 0 : index
    %c0_6 = arith.constant 0 : index
    %3 = vector.load %arg8[%c0_5, %c0_6] : memref<4x32xbf16, #tpu.memory_space<vmem>>, vector<4x32xbf16>
    %c0_7 = arith.constant 0 : index
    %c0_8 = arith.constant 0 : index
    %4 = vector.load %arg3[%c0_7, %c0_8] : memref<32x256xf32, #tpu.memory_space<vmem>>, vector<32x256xf32>
    %c0_9 = arith.constant 0 : index
    %c0_10 = arith.constant 0 : index
    %5 = vector.load %arg5[%c0_9, %c0_10] : memref<64x256xf32, #tpu.memory_space<vmem>>, vector<64x256xf32>
    %c0_11 = arith.constant 0 : index
    %c0_12 = arith.constant 0 : index
    %6 = vector.load %arg7[%c0_11, %c0_12] : memref<32x256xf32, #tpu.memory_space<vmem>>, vector<32x256xf32>
    %c0_13 = arith.constant 0 : index
    %c0_14 = arith.constant 0 : index
    %7 = vector.load %arg9[%c0_13, %c0_14] : memref<4x256xf32, #tpu.memory_space<vmem>>, vector<4x256xf32>
    %c0_i32 = arith.constant 0 : i32
    %c256_i32 = arith.constant 256 : i32
    %8 = arith.muli %c0_i32, %c256_i32 : i32
    %9 = tpu.assume_multiple %8, 256 : i32
    %c0_15 = arith.constant 0 : index
    %10 = arith.index_cast %9 : i32 to index
    %11 = vector.load %arg1[%c0_15, %10] : memref<8x256xbf16, #tpu.memory_space<vmem>>, vector<8x256xbf16>
    %cst = arith.constant dense<0.000000e+00> : vector<32x256xf32>
    %12 = tpu.matmul %0, %11, %cst {dimension_numbers = #tpu.dot_dimension_numbers<[1], [0], [0], [1], [0, 0, 1, 1], [], []>} : vector<32x8xbf16>, vector<8x256xbf16>, vector<32x256xf32> -> vector<32x256xf32>
    %13 = arith.addf %12, %4 : vector<32x256xf32>
    %cst_16 = arith.constant 5.000000e-01 : f32
    %14 = vector.broadcast %cst_16 : f32 to vector<32x256xf32>
    %15 = arith.mulf %14, %13 : vector<32x256xf32>
    %16 = math.tanh %15 : vector<32x256xf32>
    %cst_17 = arith.constant 5.000000e-01 : f32
    %17 = vector.broadcast %cst_17 : f32 to vector<32x256xf32>
    %18 = arith.mulf %17, %16 : vector<32x256xf32>
    %cst_18 = arith.constant 5.000000e-01 : f32
    %19 = vector.broadcast %cst_18 : f32 to vector<32x256xf32>
    %20 = arith.addf %18, %19 : vector<32x256xf32>
    %21 = arith.truncf %20 : vector<32x256xf32> to vector<32x256xbf16>
    %cst_19 = arith.constant dense<0.000000e+00> : vector<64x256xf32>
    %22 = tpu.matmul %1, %21, %cst_19 {dimension_numbers = #tpu.dot_dimension_numbers<[1], [0], [0], [1], [0, 0, 1, 1], [], []>} : vector<64x32xbf16>, vector<32x256xbf16>, vector<64x256xf32> -> vector<64x256xf32>
    %23 = arith.addf %22, %5 : vector<64x256xf32>
    %cst_20 = arith.constant 5.000000e-01 : f32
    %24 = vector.broadcast %cst_20 : f32 to vector<64x256xf32>
    %25 = arith.mulf %24, %23 : vector<64x256xf32>
    %26 = math.tanh %25 : vector<64x256xf32>
    %cst_21 = arith.constant 5.000000e-01 : f32
    %27 = vector.broadcast %cst_21 : f32 to vector<64x256xf32>
    %28 = arith.mulf %27, %26 : vector<64x256xf32>
    %cst_22 = arith.constant 5.000000e-01 : f32
    %29 = vector.broadcast %cst_22 : f32 to vector<64x256xf32>
    %30 = arith.addf %28, %29 : vector<64x256xf32>
    %31 = arith.truncf %30 : vector<64x256xf32> to vector<64x256xbf16>
    %cst_23 = arith.constant dense<0.000000e+00> : vector<32x256xf32>
    %32 = tpu.matmul %2, %31, %cst_23 {dimension_numbers = #tpu.dot_dimension_numbers<[1], [0], [0], [1], [0, 0, 1, 1], [], []>} : vector<32x64xbf16>, vector<64x256xbf16>, vector<32x256xf32> -> vector<32x256xf32>
    %33 = arith.addf %32, %6 : vector<32x256xf32>
    %cst_24 = arith.constant 5.000000e-01 : f32
    %34 = vector.broadcast %cst_24 : f32 to vector<32x256xf32>
    %35 = arith.mulf %34, %33 : vector<32x256xf32>
    %36 = math.tanh %35 : vector<32x256xf32>
    %cst_25 = arith.constant 5.000000e-01 : f32
    %37 = vector.broadcast %cst_25 : f32 to vector<32x256xf32>
    %38 = arith.mulf %37, %36 : vector<32x256xf32>
    %cst_26 = arith.constant 5.000000e-01 : f32
    %39 = vector.broadcast %cst_26 : f32 to vector<32x256xf32>
    %40 = arith.addf %38, %39 : vector<32x256xf32>
    %41 = arith.truncf %40 : vector<32x256xf32> to vector<32x256xbf16>
    %cst_27 = arith.constant dense<0.000000e+00> : vector<4x256xf32>
    %42 = tpu.matmul %3, %41, %cst_27 {dimension_numbers = #tpu.dot_dimension_numbers<[1], [0], [0], [1], [0, 0, 1, 1], [], []>} : vector<4x32xbf16>, vector<32x256xbf16>, vector<4x256xf32> -> vector<4x256xf32>
    %43 = arith.addf %42, %7 : vector<4x256xf32>
    %c0_28 = arith.constant 0 : index
    %44 = arith.index_cast %9 : i32 to index
    %45 = vector.load %arg10[%c0_28, %44] : memref<4x256xf32, #tpu.memory_space<vmem>>, vector<4x256xf32>
    tpu.vector_store %arg10[%c0_28, %44], %43 {strides = array<i32>} : memref<4x256xf32, #tpu.memory_space<vmem>>, vector<4x256xf32>,
    %c1_i32 = arith.constant 1 : i32
    return
  }
  func.func @transform_0(%arg0: i32) -> (i32, i32) {
    %c0_i32 = arith.constant 0 : i32
    %c0_i32_0 = arith.constant 0 : i32
    return %c0_i32, %arg0 : i32, i32
  }
  func.func @transform_1(%arg0: i32) -> (i32, i32) {
    %c0_i32 = arith.constant 0 : i32
    %c0_i32_0 = arith.constant 0 : i32
    %c0_i32_1 = arith.constant 0 : i32
    return %c0_i32, %c0_i32_0 : i32, i32
  }
  func.func @transform_2(%arg0: i32) -> (i32, i32) {
    %c0_i32 = arith.constant 0 : i32
    %c0_i32_0 = arith.constant 0 : i32
    %c0_i32_1 = arith.constant 0 : i32
    return %c0_i32, %c0_i32_0 : i32, i32
  }
  func.func @transform_3(%arg0: i32) -> (i32, i32) {
    %c0_i32 = arith.constant 0 : i32
    %c0_i32_0 = arith.constant 0 : i32
    %c0_i32_1 = arith.constant 0 : i32
    return %c0_i32, %c0_i32_0 : i32, i32
  }
  func.func @transform_4(%arg0: i32) -> (i32, i32) {
    %c0_i32 = arith.constant 0 : i32
    %c0_i32_0 = arith.constant 0 : i32
    %c0_i32_1 = arith.constant 0 : i32
    return %c0_i32, %c0_i32_0 : i32, i32
  }
  func.func @transform_5(%arg0: i32) -> (i32, i32) {
    %c0_i32 = arith.constant 0 : i32
    %c0_i32_0 = arith.constant 0 : i32
    %c0_i32_1 = arith.constant 0 : i32
    return %c0_i32, %c0_i32_0 : i32, i32
  }
  func.func @transform_6(%arg0: i32) -> (i32, i32) {
    %c0_i32 = arith.constant 0 : i32
    %c0_i32_0 = arith.constant 0 : i32
    %c0_i32_1 = arith.constant 0 : i32
    return %c0_i32, %c0_i32_0 : i32, i32
  }
  func.func @transform_7(%arg0: i32) -> (i32, i32) {
    %c0_i32 = arith.constant 0 : i32
    %c0_i32_0 = arith.constant 0 : i32
    %c0_i32_1 = arith.constant 0 : i32
    return %c0_i32, %c0_i32_0 : i32, i32
  }
  func.func @transform_8(%arg0: i32) -> (i32, i32) {
    %c0_i32 = arith.constant 0 : i32
    %c0_i32_0 = arith.constant 0 : i32
    %c0_i32_1 = arith.constant 0 : i32
    return %c0_i32, %c0_i32_0 : i32, i32
  }
  func.func @transform_9(%arg0: i32) -> (i32, i32) {
    %c0_i32 = arith.constant 0 : i32
    %c0_i32_0 = arith.constant 0 : i32
    return %c0_i32, %arg0 : i32, i32
  }
}

</mosaic_0001>

<llo_original>
// kernel: tpu_custom_call.1
$region0: #{tpu_custom_call.1}
  #allocation0 [shape = 'u32[]', space=smem, size = 0x4, offset = 0x4, fixed_abs, tag = 'smem constant byte address 0x4 - core index']
  #allocation1 [shape = 'u32[144,128]{1,0:T(1,128)}', space=vmem, size = 0x12000, scoped, tag = 'internal scratch']
  %s0 = inlined_call_operand.hbm [shape: bf16[8,256], index: 0, kind: input, shape index: {}]
  %s1 = inlined_call_operand.vmem [shape: bf16[32,8], index: 1, kind: input, shape index: {}]
  %s2 = inlined_call_operand.vmem [shape: f32[32,256], index: 2, kind: input, shape index: {}]
  %s3 = inlined_call_operand.vmem [shape: bf16[64,32], index: 3, kind: input, shape index: {}]
  %s4 = inlined_call_operand.hbm [shape: f32[64,256], index: 4, kind: input, shape index: {}]
  %s5 = inlined_call_operand.vmem [shape: bf16[32,64], index: 5, kind: input, shape index: {}]
  %s6 = inlined_call_operand.hbm [shape: f32[32,256], index: 6, kind: input, shape index: {}]
  %s7 = inlined_call_operand.vmem [shape: bf16[4,32], index: 7, kind: input, shape index: {}]
  %s8 = inlined_call_operand.vmem [shape: f32[4,256], index: 8, kind: input, shape index: {}]
  %s9 = inlined_call_operand.hbm [shape: f32[4,256], index: 9, kind: output, shape index: {}]
  %s10 = sld [smem:[#allocation0]]
  $region58: #{tpu_custom_call.1} parent=0
    _
  %s12 = ssub.s32 1, %s10
  %s13 = scalar_select 0, %s12, %s10
  $region1: #{tpu_custom_call.1} parent=0
    #allocation2 [shape = 'u8[4096]{0}', space=vmem, size = 0x1000, scoped, tag = 'input window, operand 0, single buffered']
    #allocation3 [shape = 's32[1]{0}', space=sflag, size = 0x4, scoped, tag = 'scoped memory for tpu_custom_call.1']
    #allocation4 [shape = 's32[1]{0}', space=sflag, size = 0x4, scoped, tag = 'scoped memory for tpu_custom_call.1']
    #allocation5 [shape = 'u8[65536]{0}', space=vmem, size = 0x10000, scoped, tag = 'input window, operand 4, single buffered']
    #allocation6 [shape = 's32[1]{0}', space=sflag, size = 0x4, scoped, tag = 'scoped memory for tpu_custom_call.1']
    #allocation7 [shape = 'u8[32768]{0}', space=vmem, size = 0x8000, scoped, tag = 'input window, operand 6, single buffered']
    #allocation8 [shape = 'u8[4096]{0}', space=vmem, size = 0x1000, scoped, tag = 'output window, operand 0, single buffered']
    %14 = vsyncpa [#allocation3], 0
    %15 = vsyncpa [#allocation6], 0
    %16 = vsyncpa [#allocation4], 0
    // Predicated region
    $region2: #{tpu_custom_call.1} parent=1 // pred_check
      _
    $region3: #{tpu_custom_call.1} parent=1 // pred_check_branch
      %18 = sbr.rel (0) target = $region5
    $region4: #{tpu_custom_call.1} parent=1 // pred_region
      %s20 = ssub.s32 128, 128
      %21 = vsyncadd [#allocation3], %s20
      %s23 = sshll.u32 [#allocation2], 4
      %s24 = int_to_ptr.vmem [resolvable:$true] %s23
      %26 = dma.hbm_to_vmem [thread:$0]  %s0, 128, %s24, [#allocation3]
    $region5: #{tpu_custom_call.1} parent=1 // pred_fallthru
      _
    // Predicated region
    $region6: #{tpu_custom_call.1} parent=1 // pred_check
      _
    $region7: #{tpu_custom_call.1} parent=1 // pred_check_branch
      %28 = sbr.rel (0) target = $region9
    $region8: #{tpu_custom_call.1} parent=1 // pred_region
      _
    $region9: #{tpu_custom_call.1} parent=1 // pred_fallthru
      _
    // Predicated region
    $region10: #{tpu_custom_call.1} parent=1 // pred_check
      _
    $region11: #{tpu_custom_call.1} parent=1 // pred_check_branch
      %30 = sbr.rel (0) target = $region13
    $region12: #{tpu_custom_call.1} parent=1 // pred_region
      _
    $region13: #{tpu_custom_call.1} parent=1 // pred_fallthru
      _
    // Predicated region
    $region14: #{tpu_custom_call.1} parent=1 // pred_check
      _
    $region15: #{tpu_custom_call.1} parent=1 // pred_check_branch
      %32 = sbr.rel (0) target = $region17
    $region16: #{tpu_custom_call.1} parent=1 // pred_region
      _
    $region17: #{tpu_custom_call.1} parent=1 // pred_fallthru
      _
    // Predicated region
    $region18: #{tpu_custom_call.1} parent=1 // pred_check
      _
    $region19: #{tpu_custom_call.1} parent=1 // pred_check_branch
      %34 = sbr.rel (0) target = $region21
    $region20: #{tpu_custom_call.1} parent=1 // pred_region
      %s36 = ssub.s32 2048, 2048
      %37 = vsyncadd [#allocation6], %s36
      %s38 = sshll.u32 [#allocation5], 4
      %s39 = int_to_ptr.vmem [resolvable:$true] %s38
      %44 = dma.hbm_to_vmem [thread:$0]  %s4, 2048, %s39, [#allocation6], 256, 256, 16
    $region21: #{tpu_custom_call.1} parent=1 // pred_fallthru
      _
    // Predicated region
    $region22: #{tpu_custom_call.1} parent=1 // pred_check
      _
    $region23: #{tpu_custom_call.1} parent=1 // pred_check_branch
      %46 = sbr.rel (0) target = $region25
    $region24: #{tpu_custom_call.1} parent=1 // pred_region
      _
    $region25: #{tpu_custom_call.1} parent=1 // pred_fallthru
      _
    // Predicated region
    $region26: #{tpu_custom_call.1} parent=1 // pred_check
      _
    $region27: #{tpu_custom_call.1} parent=1 // pred_check_branch
      %48 = sbr.rel (0) target = $region29
    $region28: #{tpu_custom_call.1} parent=1 // pred_region
      %s50 = ssub.s32 1024, 1024
      %51 = vsyncadd [#allocation6], %s50
      %s52 = sshll.u32 [#allocation7], 4
      %s53 = int_to_ptr.vmem [resolvable:$true] %s52
      %58 = dma.hbm_to_vmem [thread:$0]  %s6, 1024, %s53, [#allocation6], 256, 256, 16
    $region29: #{tpu_custom_call.1} parent=1 // pred_fallthru
      _
    // Predicated region
    $region30: #{tpu_custom_call.1} parent=1 // pred_check
      _
    $region31: #{tpu_custom_call.1} parent=1 // pred_check_branch
      %60 = sbr.rel (0) target = $region33
    $region32: #{tpu_custom_call.1} parent=1 // pred_region
      _
    $region33: #{tpu_custom_call.1} parent=1 // pred_fallthru
      _
    // Predicated region
    $region34: #{tpu_custom_call.1} parent=1 // pred_check
      _
    $region35: #{tpu_custom_call.1} parent=1 // pred_check_branch
      %62 = sbr.rel (0) target = $region37
    $region36: #{tpu_custom_call.1} parent=1 // pred_region
      _
    $region37: #{tpu_custom_call.1} parent=1 // pred_fallthru
      _
    // Predicated region
    $region38: #{tpu_custom_call.1} parent=1 // pred_check
      _
    $region39: #{tpu_custom_call.1} parent=1 // pred_check_branch
      %64 = sbr.rel (0) target = $region41
    $region40: #{tpu_custom_call.1} parent=1 // pred_region
      %65 = dma.done [#allocation3], 128
    $region41: #{tpu_custom_call.1} parent=1 // pred_fallthru
      _
    // Predicated region
    $region42: #{tpu_custom_call.1} parent=1 // pred_check
      _
    $region43: #{tpu_custom_call.1} parent=1 // pred_check_branch
      %67 = sbr.rel (0) target = $region45
    $region44: #{tpu_custom_call.1} parent=1 // pred_region
      %68 = dma.done [#allocation6], 2048
    $region45: #{tpu_custom_call.1} parent=1 // pred_fallthru
      _
    // Predicated region
    $region46: #{tpu_custom_call.1} parent=1 // pred_check
      _
    $region47: #{tpu_custom_call.1} parent=1 // pred_check_branch
      %70 = sbr.rel (0) target = $region49
    $region48: #{tpu_custom_call.1} parent=1 // pred_region
      %71 = dma.done [#allocation6], 1024
    $region49: #{tpu_custom_call.1} parent=1 // pred_fallthru
      _
    %v73 = vld [vmem:[%s1] sm:$0xf]
    %v74 = vld [vmem:[%s1 + $0x4] sm:$0xf]
    %v75 = vld [vmem:[%s1 + $0x8] sm:$0xf]
    %v76 = vld [vmem:[%s1 + $0xc] sm:$0xf]
    %v77 = vld [vmem:[%s3] sm:$0xf]
    %v78 = vld [vmem:[%s3 + $0x4] sm:$0xf]
    %v79 = vld [vmem:[%s3 + $0x8] sm:$0xf]
    %v80 = vld [vmem:[%s3 + $0xc] sm:$0xf]
    %v81 = vld [vmem:[%s3 + $0x10] sm:$0xf]
    %v82 = vld [vmem:[%s3 + $0x14] sm:$0xf]
    %v83 = vld [vmem:[%s3 + $0x18] sm:$0xf]
    %v84 = vld [vmem:[%s3 + $0x1c] sm:$0xf]
    %v85 = vld [vmem:[%s5] sm:$0xf]
    %v86 = vld [vmem:[%s5 + $0x4] sm:$0xf]
    %v87 = vld [vmem:[%s5 + $0x8] sm:$0xf]
    %v88 = vld [vmem:[%s5 + $0xc] sm:$0xf]
    %v89 = vld [vmem:[%s7] sm:$0x3]
    %v90 = vld [vmem:[%s2] sm:$0xff]
    %v91 = vld [vmem:[%s2 + $0x8] sm:$0xff]
    %v92 = vld [vmem:[%s2 + $0x10] sm:$0xff]
    %v93 = vld [vmem:[%s2 + $0x18] sm:$0xff]
    %v94 = vld [vmem:[%s2 + $0x20] sm:$0xff]
    %v95 = vld [vmem:[%s2 + $0x28] sm:$0xff]
    %v96 = vld [vmem:[%s2 + $0x30] sm:$0xff]
    %v97 = vld [vmem:[%s2 + $0x38] sm:$0xff]
    %v98 = vld [vmem:[#allocation5] sm:$0xff]
    %v99 = vld [vmem:[#allocation5 + $0x8] sm:$0xff]
    %v100 = vld [vmem:[#allocation5 + $0x10] sm:$0xff]
    %v101 = vld [vmem:[#allocation5 + $0x18] sm:$0xff]
    %v102 = vld [vmem:[#allocation5 + $0x20] sm:$0xff]
    %v103 = vld [vmem:[#allocation5 + $0x28] sm:$0xff]
    %v104 = vld [vmem:[#allocation5 + $0x30] sm:$0xff]
    %v105 = vld [vmem:[#allocation5 + $0x38] sm:$0xff]
    %v106 = vld [vmem:[#allocation5 + $0x40] sm:$0xff]
    %v107 = vld [vmem:[#allocation5 + $0x48] sm:$0xff]
    %v108 = vld [vmem:[#allocation5 + $0x50] sm:$0xff]
    %v109 = vld [vmem:[#allocation5 + $0x58] sm:$0xff]
    %v110 = vld [vmem:[#allocation5 + $0x60] sm:$0xff]
    %v111 = vld [vmem:[#allocation5 + $0x68] sm:$0xff]
    %v112 = vld [vmem:[#allocation5 + $0x70] sm:$0xff]
    %v113 = vld [vmem:[#allocation5 + $0x78] sm:$0xff]
    %v114 = vld [vmem:[#allocation7] sm:$0xff]
    %v115 = vld [vmem:[#allocation7 + $0x8] sm:$0xff]
    %v116 = vld [vmem:[#allocation7 + $0x10] sm:$0xff]
    %v117 = vld [vmem:[#allocation7 + $0x18] sm:$0xff]
    %v118 = vld [vmem:[#allocation7 + $0x20] sm:$0xff]
    %v119 = vld [vmem:[#allocation7 + $0x28] sm:$0xff]
    %v120 = vld [vmem:[#allocation7 + $0x30] sm:$0xff]
    %v121 = vld [vmem:[#allocation7 + $0x38] sm:$0xff]
    %v122 = vld [vmem:[%s8] sm:$0xff]
    %v123 = vld [vmem:[#allocation2] sm:$0xff]
    %v128 = vunpack.c.l.b16 %v73
    %v129 = vunpack.c.l.b16 %v74
    %v130 = vunpack.c.l.b16 %v75
    %v131 = vunpack.c.l.b16 %v76
    %v132 = vpack.c.b16 %v129, %v128
    %v133 = vpack.c.b16 %v131, %v130
    %v135 = vunpack.c.l.b16 %v123
    %v136 = vunpack.c.h.b16 %v123
    %v137 = vpack.c.b16 %v135, %v135
    %v138 = vpack.c.b16 %v136, %v136
    %vm139 = vcmask 64512
    %v141 = vsel %vm139, %v132, 0
    %v144 = vsel %vm139, %v133, 0
    %vm146 = vcmask 1043456
    %v148 = vsel %vm146, %v137, 0
    %v151 = vsel %vm146, %v138, 0
    %153 = vmatprep.subr.bf16.mxu0 %v151
    %154 = vmatpush1.bf16.msra.mxu0 %v148
    %155 = vmatprep.subr.bf16.mxu0 0
    %156 = vmatpush1.bf16.msra.mxu0 0
    %157 = vmatprep.subr.bf16.mxu0 0
    %158 = vmatpush1.bf16.msra.mxu0 0
    %159 = vmatprep.subr.bf16.mxu0 0
    %160 = vmatpush1.bf16.msra.mxu0 0
    %161 = vmatprep.subr.bf16.mxu0 0
    %162 = vmatpush1.bf16.msra.mxu0 0
    %163 = vmatprep.subr.bf16.mxu0 0
    %164 = vmatpush1.bf16.msra.mxu0 0
    %165 = vmatprep.subr.bf16.mxu0 0
    %166 = vmatpush1.bf16.msra.mxu0 0
    %167 = vmatprep.subr.bf16.mxu0 0
    %168 = vmatpush1.bf16.msra.mxu0 0
    %169 = vmatprep.subr.bf16.mxu0 0
    %170 = vmatpush1.bf16.msra.mxu0 0
    %171 = vmatprep.subr.bf16.mxu0 0
    %172 = vmatpush1.bf16.msra.mxu0 0
    %173 = vmatprep.subr.bf16.mxu0 0
    %174 = vmatpush1.bf16.msra.mxu0 0
    %175 = vmatprep.subr.bf16.mxu0 0
    %176 = vmatpush1.bf16.msra.mxu0 0
    %177 = vmatprep.subr.bf16.mxu0 0
    %178 = vmatpush1.bf16.msra.mxu0 0
    %179 = vmatprep.subr.bf16.mxu0 0
    %180 = vmatpush1.bf16.msra.mxu0 0
    %181 = vmatprep.subr.bf16.mxu0 0
    %182 = vmatpush1.bf16.msra.mxu0 0
    %183 = vmatprep.subr.bf16.mxu0 0
    %184 = vmatpush1.bf16.msra.mxu0 0
    %185 = vmatprep.mubr.bf16.mxu0 0
    %186 = vmatmul.mubr.bf16.gmra.mrb[0].mxu0 %v141
    %v187 = vpop.f32.mrb[0].mxu0
    %v188 = vadd.f32 %v90, %v187
    %v189 = vpop.f32.mrb[0].mxu0
    %v190 = vadd.f32 %v91, %v189
    %v191 = vpop.f32.mrb[0].mxu0
    %v192 = vadd.f32 %v92, %v191
    %v193 = vpop.f32.mrb[0].mxu0
    %v194 = vadd.f32 %v93, %v193
    %195 = vmatprep.mubr.bf16.mxu0 0
    %196 = vmatmul.mubr.bf16.gmra.mrb[0].mxu0 %v144
    %v197 = vpop.f32.mrb[0].mxu0
    %v198 = vadd.f32 %v94, %v197
    %v199 = vpop.f32.mrb[0].mxu0
    %v200 = vadd.f32 %v95, %v199
    %v201 = vpop.f32.mrb[0].mxu0
    %v202 = vadd.f32 %v96, %v201
    %v203 = vpop.f32.mrb[0].mxu0
    %v204 = vadd.f32 %v97, %v203
    %205 = vdwg.mxu0
    %v206 = vmul.f32 %v188, 0.5
    %v207 = vmul.f32 %v190, 0.5
    %v208 = vmul.f32 %v192, 0.5
    %v209 = vmul.f32 %v194, 0.5
    %v210 = vmul.f32 %v198, 0.5
    %v211 = vmul.f32 %v200, 0.5
    %v212 = vmul.f32 %v202, 0.5
    %v213 = vmul.f32 %v204, 0.5
    %v214 = vtanh.pop %v206
    %v215 = vtanh.pop %v207
    %v216 = vtanh.pop %v208
    %v217 = vtanh.pop %v209
    %v218 = vtanh.pop %v210
    %v219 = vtanh.pop %v211
    %v220 = vtanh.pop %v212
    %v221 = vtanh.pop %v213
    %v222 = vmul.f32 %v214, 0.5
    %v223 = vmul.f32 %v215, 0.5
    %v224 = vmul.f32 %v216, 0.5
    %v225 = vmul.f32 %v217, 0.5
    %v226 = vmul.f32 %v218, 0.5
    %v227 = vmul.f32 %v219, 0.5
    %v228 = vmul.f32 %v220, 0.5
    %v229 = vmul.f32 %v221, 0.5
    %v230 = vadd.f32 %v222, 0.5
    %v231 = vadd.f32 %v223, 0.5
    %v232 = vadd.f32 %v224, 0.5
    %v233 = vadd.f32 %v225, 0.5
    %v234 = vadd.f32 %v226, 0.5
    %v235 = vadd.f32 %v227, 0.5
    %v236 = vadd.f32 %v228, 0.5
    %v237 = vadd.f32 %v229, 0.5
    %v238 = vpack.c.bf16 %v232, %v230
    %v239 = vpack.c.bf16 %v233, %v231
    %v240 = vpack.c.bf16 %v236, %v234
    %v241 = vpack.c.bf16 %v237, %v235
    %v250 = vunpack.c.l.b16 %v77
    %v251 = vunpack.c.l.b16 %v78
    %v252 = vunpack.c.l.b16 %v79
    %v253 = vunpack.c.l.b16 %v80
    %v254 = vunpack.c.l.b16 %v81
    %v255 = vunpack.c.l.b16 %v82
    %v256 = vunpack.c.l.b16 %v83
    %v257 = vunpack.c.l.b16 %v84
    %v258 = vpack.c.b16 %v251, %v250
    %v259 = vpack.c.b16 %v253, %v252
    %v260 = vpack.c.b16 %v255, %v254
    %v261 = vpack.c.b16 %v257, %v256
    %vm262 = vcmask 261120
    %v264 = vsel %vm262, %v258, 0
    %v267 = vsel %vm262, %v259, 0
    %v270 = vsel %vm262, %v260, 0
    %v273 = vsel %vm262, %v261, 0
    %275 = vmatprep.subr.bf16.mxu0 %v239
    %276 = vmatpush1.bf16.msra.mxu0 %v238
    %277 = vmatprep.subr.bf16.mxu0 %v241
    %278 = vmatpush1.bf16.msra.mxu0 %v240
    %279 = vmatprep.subr.bf16.mxu0 0
    %280 = vmatpush1.bf16.msra.mxu0 0
    %281 = vmatprep.subr.bf16.mxu0 0
    %282 = vmatpush1.bf16.msra.mxu0 0
    %283 = vmatprep.subr.bf16.mxu0 0
    %284 = vmatpush1.bf16.msra.mxu0 0
    %285 = vmatprep.subr.bf16.mxu0 0
    %286 = vmatpush1.bf16.msra.mxu0 0
    %287 = vmatprep.subr.bf16.mxu0 0
    %288 = vmatpush1.bf16.msra.mxu0 0
    %289 = vmatprep.subr.bf16.mxu0 0
    %290 = vmatpush1.bf16.msra.mxu0 0
    %291 = vmatprep.subr.bf16.mxu0 0
    %292 = vmatpush1.bf16.msra.mxu0 0
    %293 = vmatprep.subr.bf16.mxu0 0
    %294 = vmatpush1.bf16.msra.mxu0 0
    %295 = vmatprep.subr.bf16.mxu0 0
    %296 = vmatpush1.bf16.msra.mxu0 0
    %297 = vmatprep.subr.bf16.mxu0 0
    %298 = vmatpush1.bf16.msra.mxu0 0
    %299 = vmatprep.subr.bf16.mxu0 0
    %300 = vmatpush1.bf16.msra.mxu0 0
    %301 = vmatprep.subr.bf16.mxu0 0
    %302 = vmatpush1.bf16.msra.mxu0 0
    %303 = vmatprep.subr.bf16.mxu0 0
    %304 = vmatpush1.bf16.msra.mxu0 0
    %305 = vmatprep.subr.bf16.mxu0 0
    %306 = vmatpush1.bf16.msra.mxu0 0
    %307 = vmatprep.mubr.bf16.mxu0 0
    %308 = vmatmul.mubr.bf16.gmra.mrb[0].mxu0 %v264
    %v309 = vpop.f32.mrb[0].mxu0
    %v310 = vadd.f32 %v98, %v309
    %v311 = vpop.f32.mrb[0].mxu0
    %v312 = vadd.f32 %v99, %v311
    %v313 = vpop.f32.mrb[0].mxu0
    %v314 = vadd.f32 %v100, %v313
    %v315 = vpop.f32.mrb[0].mxu0
    %v316 = vadd.f32 %v101, %v315
    %317 = vmatprep.mubr.bf16.mxu0 0
    %318 = vmatmul.mubr.bf16.gmra.mrb[0].mxu0 %v267
    %v319 = vpop.f32.mrb[0].mxu0
    %v320 = vadd.f32 %v102, %v319
    %v321 = vpop.f32.mrb[0].mxu0
    %v322 = vadd.f32 %v103, %v321
    %v323 = vpop.f32.mrb[0].mxu0
    %v324 = vadd.f32 %v104, %v323
    %v325 = vpop.f32.mrb[0].mxu0
    %v326 = vadd.f32 %v105, %v325
    %327 = vmatprep.mubr.bf16.mxu0 0
    %328 = vmatmul.mubr.bf16.gmra.mrb[0].mxu0 %v270
    %v329 = vpop.f32.mrb[0].mxu0
    %v330 = vadd.f32 %v106, %v329
    %v331 = vpop.f32.mrb[0].mxu0
    %v332 = vadd.f32 %v107, %v331
    %v333 = vpop.f32.mrb[0].mxu0
    %v334 = vadd.f32 %v108, %v333
    %v335 = vpop.f32.mrb[0].mxu0
    %v336 = vadd.f32 %v109, %v335
    %337 = vmatprep.mubr.bf16.mxu0 0
    %338 = vmatmul.mubr.bf16.gmra.mrb[0].mxu0 %v273
    %v339 = vpop.f32.mrb[0].mxu0
    %v340 = vadd.f32 %v110, %v339
    %v341 = vpop.f32.mrb[0].mxu0
    %v342 = vadd.f32 %v111, %v341
    %v343 = vpop.f32.mrb[0].mxu0
    %v344 = vadd.f32 %v112, %v343
    %v345 = vpop.f32.mrb[0].mxu0
    %v346 = vadd.f32 %v113, %v345
    %347 = vdwg.mxu0
    %v348 = vmul.f32 %v310, 0.5
    %v349 = vmul.f32 %v312, 0.5
    %v350 = vmul.f32 %v314, 0.5
    %v351 = vmul.f32 %v316, 0.5
    %v352 = vmul.f32 %v320, 0.5
    %v353 = vmul.f32 %v322, 0.5
    %v354 = vmul.f32 %v324, 0.5
    %v355 = vmul.f32 %v326, 0.5
    %v356 = vmul.f32 %v330, 0.5
    %v357 = vmul.f32 %v332, 0.5
    %v358 = vmul.f32 %v334, 0.5
    %v359 = vmul.f32 %v336, 0.5
    %v360 = vmul.f32 %v340, 0.5
    %v361 = vmul.f32 %v342, 0.5
    %v362 = vmul.f32 %v344, 0.5
    %v363 = vmul.f32 %v346, 0.5
    %v364 = vtanh.pop %v348
    %v365 = vtanh.pop %v349
    %v366 = vtanh.pop %v350
    %v367 = vtanh.pop %v351
    %v368 = vtanh.pop %v352
    %v369 = vtanh.pop %v353
    %v370 = vtanh.pop %v354
    %v371 = vtanh.pop %v355
    %v372 = vtanh.pop %v356
    %v373 = vtanh.pop %v357
    %v374 = vtanh.pop %v358
    %v375 = vtanh.pop %v359
    %v376 = vtanh.pop %v360
    %v377 = vtanh.pop %v361
    %v378 = vtanh.pop %v362
    %v379 = vtanh.pop %v363
    %v380 = vmul.f32 %v364, 0.5
    %v381 = vmul.f32 %v365, 0.5
    %v382 = vmul.f32 %v366, 0.5
    %v383 = vmul.f32 %v367, 0.5
    %v384 = vmul.f32 %v368, 0.5
    %v385 = vmul.f32 %v369, 0.5
    %v386 = vmul.f32 %v370, 0.5
    %v387 = vmul.f32 %v371, 0.5
    %v388 = vmul.f32 %v372, 0.5
    %v389 = vmul.f32 %v373, 0.5
    %v390 = vmul.f32 %v374, 0.5
    %v391 = vmul.f32 %v375, 0.5
    %v392 = vmul.f32 %v376, 0.5
    %v393 = vmul.f32 %v377, 0.5
    %v394 = vmul.f32 %v378, 0.5
    %v395 = vmul.f32 %v379, 0.5
    %v396 = vadd.f32 %v380, 0.5
    %v397 = vadd.f32 %v381, 0.5
    %v398 = vadd.f32 %v382, 0.5
    %v399 = vadd.f32 %v383, 0.5
    %v400 = vadd.f32 %v384, 0.5
    %v401 = vadd.f32 %v385, 0.5
    %v402 = vadd.f32 %v386, 0.5
    %v403 = vadd.f32 %v387, 0.5
    %v404 = vadd.f32 %v388, 0.5
    %v405 = vadd.f32 %v389, 0.5
    %v406 = vadd.f32 %v390, 0.5
    %v407 = vadd.f32 %v391, 0.5
    %v408 = vadd.f32 %v392, 0.5
    %v409 = vadd.f32 %v393, 0.5
    %v410 = vadd.f32 %v394, 0.5
    %v411 = vadd.f32 %v395, 0.5
    %v412 = vpack.c.bf16 %v398, %v396
    %v413 = vpack.c.bf16 %v399, %v397
    %v414 = vpack.c.bf16 %v402, %v400
    %v415 = vpack.c.bf16 %v403, %v401
    %v416 = vpack.c.bf16 %v406, %v404
    %v417 = vpack.c.bf16 %v407, %v405
    %v418 = vpack.c.bf16 %v410, %v408
    %v419 = vpack.c.bf16 %v411, %v409
    %v424 = vunpack.c.l.b16 %v85
    %v425 = vunpack.c.l.b16 %v86
    %v426 = vunpack.c.l.b16 %v87
    %v427 = vunpack.c.l.b16 %v88
    %v428 = vpack.c.b16 %v425, %v424
    %v429 = vpack.c.b16 %v427, %v426
    %vm430 = vcmask 523264
    %v432 = vsel %vm430, %v428, 0
    %v435 = vsel %vm430, %v429, 0
    %437 = vmatprep.subr.bf16.mxu0 %v413
    %438 = vmatpush1.bf16.msra.mxu0 %v412
    %439 = vmatprep.subr.bf16.mxu0 %v415
    %440 = vmatpush1.bf16.msra.mxu0 %v414
    %441 = vmatprep.subr.bf16.mxu0 %v417
    %442 = vmatpush1.bf16.msra.mxu0 %v416
    %443 = vmatprep.subr.bf16.mxu0 %v419
    %444 = vmatpush1.bf16.msra.mxu0 %v418
    %445 = vmatprep.subr.bf16.mxu0 0
    %446 = vmatpush1.bf16.msra.mxu0 0
    %447 = vmatprep.subr.bf16.mxu0 0
    %448 = vmatpush1.bf16.msra.mxu0 0
    %449 = vmatprep.subr.bf16.mxu0 0
    %450 = vmatpush1.bf16.msra.mxu0 0
    %451 = vmatprep.subr.bf16.mxu0 0
    %452 = vmatpush1.bf16.msra.mxu0 0
    %453 = vmatprep.subr.bf16.mxu0 0
    %454 = vmatpush1.bf16.msra.mxu0 0
    %455 = vmatprep.subr.bf16.mxu0 0
    %456 = vmatpush1.bf16.msra.mxu0 0
    %457 = vmatprep.subr.bf16.mxu0 0
    %458 = vmatpush1.bf16.msra.mxu0 0
    %459 = vmatprep.subr.bf16.mxu0 0
    %460 = vmatpush1.bf16.msra.mxu0 0
    %461 = vmatprep.subr.bf16.mxu0 0
    %462 = vmatpush1.bf16.msra.mxu0 0
    %463 = vmatprep.subr.bf16.mxu0 0
    %464 = vmatpush1.bf16.msra.mxu0 0
    %465 = vmatprep.subr.bf16.mxu0 0
    %466 = vmatpush1.bf16.msra.mxu0 0
    %467 = vmatprep.subr.bf16.mxu0 0
    %468 = vmatpush1.bf16.msra.mxu0 0
    %469 = vmatprep.mubr.bf16.mxu0 0
    %470 = vmatmul.mubr.bf16.gmra.mrb[0].mxu0 %v432
    %v471 = vpop.f32.mrb[0].mxu0
    %v472 = vadd.f32 %v114, %v471
    %v473 = vpop.f32.mrb[0].mxu0
    %v474 = vadd.f32 %v115, %v473
    %v475 = vpop.f32.mrb[0].mxu0
    %v476 = vadd.f32 %v116, %v475
    %v477 = vpop.f32.mrb[0].mxu0
    %v478 = vadd.f32 %v117, %v477
    %479 = vmatprep.mubr.bf16.mxu0 0
    %480 = vmatmul.mubr.bf16.gmra.mrb[0].mxu0 %v435
    %v481 = vpop.f32.mrb[0].mxu0
    %v482 = vadd.f32 %v118, %v481
    %v483 = vpop.f32.mrb[0].mxu0
    %v484 = vadd.f32 %v119, %v483
    %v485 = vpop.f32.mrb[0].mxu0
    %v486 = vadd.f32 %v120, %v485
    %v487 = vpop.f32.mrb[0].mxu0
    %v488 = vadd.f32 %v121, %v487
    %489 = vdwg.mxu0
    %v490 = vmul.f32 %v472, 0.5
    %v491 = vmul.f32 %v474, 0.5
    %v492 = vmul.f32 %v476, 0.5
    %v493 = vmul.f32 %v478, 0.5
    %v494 = vmul.f32 %v482, 0.5
    %v495 = vmul.f32 %v484, 0.5
    %v496 = vmul.f32 %v486, 0.5
    %v497 = vmul.f32 %v488, 0.5
    %v498 = vtanh.pop %v490
    %v499 = vtanh.pop %v491
    %v500 = vtanh.pop %v492
    %v501 = vtanh.pop %v493
    %v502 = vtanh.pop %v494
    %v503 = vtanh.pop %v495
    %v504 = vtanh.pop %v496
    %v505 = vtanh.pop %v497
    %v506 = vmul.f32 %v498, 0.5
    %v507 = vmul.f32 %v499, 0.5
    %v508 = vmul.f32 %v500, 0.5
    %v509 = vmul.f32 %v501, 0.5
    %v510 = vmul.f32 %v502, 0.5
    %v511 = vmul.f32 %v503, 0.5
    %v512 = vmul.f32 %v504, 0.5
    %v513 = vmul.f32 %v505, 0.5
    %v514 = vadd.f32 %v506, 0.5
    %v515 = vadd.f32 %v507, 0.5
    %v516 = vadd.f32 %v508, 0.5
    %v517 = vadd.f32 %v509, 0.5
    %v518 = vadd.f32 %v510, 0.5
    %v519 = vadd.f32 %v511, 0.5
    %v520 = vadd.f32 %v512, 0.5
    %v521 = vadd.f32 %v513, 0.5
    %v522 = vpack.c.bf16 %v516, %v514
    %v523 = vpack.c.bf16 %v517, %v515
    %v524 = vpack.c.bf16 %v520, %v518
    %v525 = vpack.c.bf16 %v521, %v519
    %v527 = vcombine.high %v122, %v122
    %v530 = vsel %vm262, %v89, 0
    %532 = vmatprep.subr.bf16.mxu0 %v523
    %533 = vmatpush1.bf16.msra.mxu0 %v522
    %534 = vmatprep.subr.bf16.mxu0 %v525
    %535 = vmatpush1.bf16.msra.mxu0 %v524
    %536 = vmatprep.subr.bf16.mxu0 0
    %537 = vmatpush1.bf16.msra.mxu0 0
    %538 = vmatprep.subr.bf16.mxu0 0
    %539 = vmatpush1.bf16.msra.mxu0 0
    %540 = vmatprep.subr.bf16.mxu0 0
    %541 = vmatpush1.bf16.msra.mxu0 0
    %542 = vmatprep.subr.bf16.mxu0 0
    %543 = vmatpush1.bf16.msra.mxu0 0
    %544 = vmatprep.subr.bf16.mxu0 0
    %545 = vmatpush1.bf16.msra.mxu0 0
    %546 = vmatprep.subr.bf16.mxu0 0
    %547 = vmatpush1.bf16.msra.mxu0 0
    %548 = vmatprep.subr.bf16.mxu0 0
    %549 = vmatpush1.bf16.msra.mxu0 0
    %550 = vmatprep.subr.bf16.mxu0 0
    %551 = vmatpush1.bf16.msra.mxu0 0
    %552 = vmatprep.subr.bf16.mxu0 0
    %553 = vmatpush1.bf16.msra.mxu0 0
    %554 = vmatprep.subr.bf16.mxu0 0
    %555 = vmatpush1.bf16.msra.mxu0 0
    %556 = vmatprep.subr.bf16.mxu0 0
    %557 = vmatpush1.bf16.msra.mxu0 0
    %558 = vmatprep.subr.bf16.mxu0 0
    %559 = vmatpush1.bf16.msra.mxu0 0
    %560 = vmatprep.subr.bf16.mxu0 0
    %561 = vmatpush1.bf16.msra.mxu0 0
    %562 = vmatprep.subr.bf16.mxu0 0
    %563 = vmatpush1.bf16.msra.mxu0 0
    %564 = vmatprep.mubr.bf16.mxu0 0
    %565 = vmatmul.mubr.bf16.gmra.mrb[0].mxu0 %v530
    %v566 = vpop.f32.mrb[0].mxu0
    %v567 = vadd.f32 %v122, %v566
    %v568 = vpop.f32.mrb[0].mxu0
    %v569 = vadd.f32 %v527, %v568
    %v570 = vpop.f32.mrb[0].mxu0
    %v571 = vpop.f32.mrb[0].mxu0
    %572 = vdwg.mxu0
    %v575 = vcombine.low %v567, %v569
    %577 = vst [vmem:[#allocation8] sm:$0xff] %v575
    // Predicated region
    $region50: #{tpu_custom_call.1} parent=1 // pred_check
      _
    $region51: #{tpu_custom_call.1} parent=1 // pred_check_branch
      %579 = sbr.rel (0) target = $region53
    $region52: #{tpu_custom_call.1} parent=1 // pred_region
      %s581 = ssub.s32 128, 128
      %582 = vsyncadd [#allocation4], %s581
      %s584 = sshll.u32 [#allocation8], 4
      %s585 = int_to_ptr.vmem [resolvable:$true] %s584
      %587 = dma.vmem_to_hbm [thread:$0]  %s585, 128, %s9, [#allocation4]
    $region53: #{tpu_custom_call.1} parent=1 // pred_fallthru
      _
    // Predicated region
    $region54: #{tpu_custom_call.1} parent=1 // pred_check
      _
    $region55: #{tpu_custom_call.1} parent=1 // pred_check_branch
      %589 = sbr.rel (0) target = $region57
    $region56: #{tpu_custom_call.1} parent=1 // pred_region
      %590 = dma.done [#allocation4], 128
    $region57: #{tpu_custom_call.1} parent=1 // pred_fallthru
      _
    %591 = vsyncpa [#allocation3], 1
    %592 = vsyncpa [#allocation6], 1
    %593 = vsyncpa [#allocation4], 1

</llo_original>
